<compile_context>
chip_gen: v7x
topology: tpu7x:2x2x1
jax: 0.10.0
libtpu: 0.0.40
codegen_flags: <defaults>
</compile_context>

<pallas_src>
import jax
import jax.numpy as jnp
from jax.experimental import pallas as pl
from jax.experimental.pallas import tpu as pltpu


def _hbm_copy_kernel(x_hbm, o_hbm, sem):
    """Copy one contiguous chunk per grid step, HBM -> HBM, 2 DMAs in flight.

    x_hbm / o_hbm are raw HBM refs of shape (n_chunks, chunk_elems); the DMA
    for chunk i is started at step i and retired (waited) at step i+1, so the
    next descriptor is issued while the previous transfer is still streaming.
    """
    i = pl.program_id(0)
    n = pl.num_programs(0)
    slot = i % 2

    # Issue this step's chunk DMA (never touches VMEM / vregs).
    pltpu.make_async_copy(x_hbm.at[i], o_hbm.at[i], sem.at[slot]).start()

    # Deferred wait: retire the previous step's DMA.  All chunks are the same
    # size, so descriptors built from chunk 0 carry the correct byte count.
    @pl.when(i > 0)
    def _():
        pltpu.make_async_copy(x_hbm.at[0], o_hbm.at[0], sem.at[1 - slot]).wait()

    # Final step: drain the last in-flight DMA.
    @pl.when(i == n - 1)
    def _():
        pltpu.make_async_copy(x_hbm.at[0], o_hbm.at[0], sem.at[slot]).wait()


def _choose_num_chunks(n_elem: int, itemsize: int,
                       target_chunk_bytes: int,
                       max_chunks: int) -> int:
    """Largest divisor of n_elem <= the chunk count implied by target bytes.

    Equal-size chunks keep every DMA descriptor identical, which the deferred
    wait relies on.  Worst case (awkward prime sizes) degenerates to a single
    whole-array DMA — still roofline-bound, never tiny tiles.
    """
    total_bytes = n_elem * itemsize
    want = max(1, min(max_chunks, -(-total_bytes // target_chunk_bytes)))
    for c in range(int(want), 0, -1):
        if n_elem % c == 0:
            return c
    return 1


def _pallas_identity_copy(x: jax.Array,
                          *,
                          target_chunk_bytes: int = 32 << 20,
                          max_chunks: int = 16) -> jax.Array:
    """Materialized identity copy via direct HBM->HBM DMA (no VMEM traffic)."""
    n_elem = x.size
    if n_elem == 0:
        return x  # nothing to copy

    itemsize = jnp.dtype(x.dtype).itemsize
    n_chunks = _choose_num_chunks(n_elem, itemsize, target_chunk_bytes,
                                  max_chunks)
    chunk = n_elem // n_chunks
    x2d = x.reshape(n_chunks, chunk)
    n_bytes = n_elem * itemsize

    out2d = pl.pallas_call(
        _hbm_copy_kernel,
        out_shape=jax.ShapeDtypeStruct((n_chunks, chunk), x.dtype),
        grid_spec=pltpu.PrefetchScalarGridSpec(
            num_scalar_prefetch=0,
            grid=(n_chunks,),
            in_specs=[pl.BlockSpec(memory_space=pl.ANY)],   # raw HBM ref
            out_specs=pl.BlockSpec(memory_space=pl.ANY),    # raw HBM ref
            scratch_shapes=[pltpu.SemaphoreType.DMA((2,))],
        ),
        compiler_params=pltpu.CompilerParams(
            # Sequential steps required by the cross-step deferred wait.
            dimension_semantics=("arbitrary",),
        ),
        cost_estimate=pl.CostEstimate(
            flops=0, transcendentals=0, bytes_accessed=2 * n_bytes),
    )(x2d)
    return out2d.reshape(x.shape)


class ShiftPallas:
    """JAX/Pallas equivalent of PrithviWxC._Shift."""

    def __init__(self):
        self._shifted = False  # mirrors the PyTorch attribute (unused in forward)

    def reset(self) -> None:
        self._shifted = False

    def forward(self, data: jax.Array, *, materialize: bool = False):
        # Fast path (default): the op is a pure identity, so return the input
        # unchanged — zero HBM traffic, matching PyTorch semantics exactly.
        # (This is also what input/output aliasing of an identity reduces to.)
        if not materialize:
            return data, {True: None, False: None}

        # Explicitly requested distinct buffer: direct HBM->HBM DMA copy.
        # Works for any shape / dtype / element count.
        return _pallas_identity_copy(data), {True: None, False: None}

    __call__ = forward


if __name__ == "__main__":
    key = jax.random.PRNGKey(0)
    # Small NCHW input consistent with the model's convention.
    x = jax.random.normal(key, (2, 4, 16, 16), dtype=jnp.float32)

    shifter = ShiftPallas()

    # 1) Default (optimal) path: identity pass-through.
    out_fast, flags_fast = shifter(x)
    out_fast = jax.block_until_ready(out_fast)
    assert out_fast.shape == x.shape and out_fast.dtype == x.dtype
    assert bool(jnp.all(out_fast == x))
    assert flags_fast == {True: None, False: None}

    # 2) Materialized copy path (exercises the HBM->HBM DMA kernel, grid=1).
    out_copy, flags_copy = shifter(x, materialize=True)
    out_copy = jax.block_until_ready(out_copy)
    assert out_copy.shape == x.shape and out_copy.dtype == x.dtype
    assert bool(jnp.all(out_copy == x))
    assert flags_copy == {True: None, False: False} if False else True
    assert flags_copy == {True: None, False: None}

    # 3) Multi-chunk (grid > 1) deferred-wait path with small target chunks.
    x2 = jax.random.normal(jax.random.PRNGKey(0), (256, 1024),
                           dtype=jnp.float32)
    y2 = jax.block_until_ready(
        _pallas_identity_copy(x2, target_chunk_bytes=64 * 1024))
    assert bool(jnp.all(y2 == x2))

    # 4) Awkward element count (3*5*7 = 105, not a multiple of 128) — the
    #    previous version silently skipped the copy here; now it still copies.
    x3 = jax.random.normal(jax.random.PRNGKey(1), (3, 5, 7),
                           dtype=jnp.float32)
    y3 = jax.block_until_ready(_pallas_identity_copy(x3))
    assert y3.shape == x3.shape and y3.dtype == x3.dtype
    assert bool(jnp.all(y3 == x3))

    # 5) bf16 materialize (sub-32-bit dtype goes through the same DMA path).
    xb = jax.random.normal(jax.random.PRNGKey(2), (2, 4, 16, 16),
                           dtype=jnp.bfloat16)
    yb, _ = shifter(xb, materialize=True)
    yb = jax.block_until_ready(yb)
    assert yb.dtype == xb.dtype and bool(jnp.all(yb == xb))

    print("KERNEL_OK")
</pallas_src>

<mosaic_0001>
module attributes {stable_mosaic.version = 11 : i64} {
  func.func @_hbm_copy_kernel(%arg0: i32, %arg1: memref<1x2048xf32, #tpu.memory_space<any>>, %arg2: memref<1x2048xf32, #tpu.memory_space<any>>, %arg3: memref<2x!tpu.dma_semaphore, #tpu.memory_space<semaphore_mem>>) attributes {dimension_semantics = [#tpu.dimension_semantics<arbitrary>], iteration_bounds = array<i64: 1>, scalar_prefetch = 0 : i64, scratch_operands = 1 : i64, tpu.core_type = #tpu.core_type<tc>, window_params = [{}, {}]} {
    %c2_i32 = arith.constant 2 : i32
    %c0_i32 = arith.constant 0 : i32
    %0 = arith.cmpi eq, %c2_i32, %c0_i32 : i32
    %c1_i32 = arith.constant 1 : i32
    %1 = arith.select %0, %c1_i32, %c2_i32 : i32
    %2 = arith.remsi %arg0, %1 : i32
    %c0_i32_0 = arith.constant 0 : i32
    %3 = arith.cmpi ne, %2, %c0_i32_0 : i32
    %c0_i32_1 = arith.constant 0 : i32
    %4 = arith.cmpi slt, %2, %c0_i32_1 : i32
    %c0_i32_2 = arith.constant 0 : i32
    %5 = arith.cmpi slt, %1, %c0_i32_2 : i32
    %6 = arith.xori %4, %5 : i1
    %7 = arith.andi %6, %3 : i1
    %8 = arith.addi %2, %1 : i32
    %9 = arith.select %7, %8, %2 : i32
    %c0_i32_3 = arith.constant 0 : i32
    %10 = tpu.memref_slice %arg1[%arg0, %c0_i32_3] : memref<1x2048xf32, #tpu.memory_space<any>> -> memref<1x2048xf32, #tpu.memory_space<any>>
    %11 = tpu.memref_squeeze %10 : memref<1x2048xf32, #tpu.memory_space<any>> -> memref<2048xf32, #tpu.memory_space<any>>
    %c0_i32_4 = arith.constant 0 : i32
    %12 = tpu.memref_slice %arg2[%arg0, %c0_i32_4] : memref<1x2048xf32, #tpu.memory_space<any>> -> memref<1x2048xf32, #tpu.memory_space<any>>
    %13 = tpu.memref_squeeze %12 : memref<1x2048xf32, #tpu.memory_space<any>> -> memref<2048xf32, #tpu.memory_space<any>>
    %14 = tpu.memref_slice %arg3[%9] : memref<2x!tpu.dma_semaphore, #tpu.memory_space<semaphore_mem>> -> memref<1x!tpu.dma_semaphore, #tpu.memory_space<semaphore_mem>>
    %15 = tpu.memref_squeeze %14 : memref<1x!tpu.dma_semaphore, #tpu.memory_space<semaphore_mem>> -> memref<!tpu.dma_semaphore, #tpu.memory_space<semaphore_mem>>
    tpu.enqueue_dma source(%11 : memref<2048xf32, #tpu.memory_space<any>>) target(%13 : memref<2048xf32, #tpu.memory_space<any>>) target_semaphore(%15 : memref<!tpu.dma_semaphore, #tpu.memory_space<semaphore_mem>>)
    %c0_i32_5 = arith.constant 0 : i32
    %16 = arith.cmpi sgt, %arg0, %c0_i32_5 : i32
    %17 = arith.extui %16 : i1 to i32
    %c0_i32_6 = arith.constant 0 : i32
    %18 = arith.cmpi ne, %17, %c0_i32_6 : i32
    scf.if %18 {
      %c1_i32_9 = arith.constant 1 : i32
      %22 = arith.subi %c1_i32_9, %9 : i32
      %c0_i32_10 = arith.constant 0 : i32
      %c0_i32_11 = arith.constant 0 : i32
      %c0_i32_12 = arith.constant 0 : i32
      %23 = tpu.memref_slice %arg1[%c0_i32_10, %c0_i32_12] : memref<1x2048xf32, #tpu.memory_space<any>> -> memref<1x2048xf32, #tpu.memory_space<any>>
      %24 = tpu.memref_squeeze %23 : memref<1x2048xf32, #tpu.memory_space<any>> -> memref<2048xf32, #tpu.memory_space<any>>
      %c0_i32_13 = arith.constant 0 : i32
      %25 = tpu.memref_slice %arg2[%c0_i32_11, %c0_i32_13] : memref<1x2048xf32, #tpu.memory_space<any>> -> memref<1x2048xf32, #tpu.memory_space<any>>
      %26 = tpu.memref_squeeze %25 : memref<1x2048xf32, #tpu.memory_space<any>> -> memref<2048xf32, #tpu.memory_space<any>>
      %27 = tpu.memref_slice %arg3[%22] : memref<2x!tpu.dma_semaphore, #tpu.memory_space<semaphore_mem>> -> memref<1x!tpu.dma_semaphore, #tpu.memory_space<semaphore_mem>>
      %28 = tpu.memref_squeeze %27 : memref<1x!tpu.dma_semaphore, #tpu.memory_space<semaphore_mem>> -> memref<!tpu.dma_semaphore, #tpu.memory_space<semaphore_mem>>
      tpu.wait_dma2 semaphore(%28 : memref<!tpu.dma_semaphore, #tpu.memory_space<semaphore_mem>>) src(%24 : memref<2048xf32, #tpu.memory_space<any>>) dst(%26 : memref<2048xf32, #tpu.memory_space<any>>)
    } else {
    }
    %c0_i32_7 = arith.constant 0 : i32
    %19 = arith.cmpi eq, %arg0, %c0_i32_7 : i32
    %20 = arith.extui %19 : i1 to i32
    %c0_i32_8 = arith.constant 0 : i32
    %21 = arith.cmpi ne, %20, %c0_i32_8 : i32
    scf.if %21 {
      %c0_i32_9 = arith.constant 0 : i32
      %c0_i32_10 = arith.constant 0 : i32
      %c0_i32_11 = arith.constant 0 : i32
      %22 = tpu.memref_slice %arg1[%c0_i32_9, %c0_i32_11] : memref<1x2048xf32, #tpu.memory_space<any>> -> memref<1x2048xf32, #tpu.memory_space<any>>
      %23 = tpu.memref_squeeze %22 : memref<1x2048xf32, #tpu.memory_space<any>> -> memref<2048xf32, #tpu.memory_space<any>>
      %c0_i32_12 = arith.constant 0 : i32
      %24 = tpu.memref_slice %arg2[%c0_i32_10, %c0_i32_12] : memref<1x2048xf32, #tpu.memory_space<any>> -> memref<1x2048xf32, #tpu.memory_space<any>>
      %25 = tpu.memref_squeeze %24 : memref<1x2048xf32, #tpu.memory_space<any>> -> memref<2048xf32, #tpu.memory_space<any>>
      %26 = tpu.memref_slice %arg3[%9] : memref<2x!tpu.dma_semaphore, #tpu.memory_space<semaphore_mem>> -> memref<1x!tpu.dma_semaphore, #tpu.memory_space<semaphore_mem>>
      %27 = tpu.memref_squeeze %26 : memref<1x!tpu.dma_semaphore, #tpu.memory_space<semaphore_mem>> -> memref<!tpu.dma_semaphore, #tpu.memory_space<semaphore_mem>>
      tpu.wait_dma2 semaphore(%27 : memref<!tpu.dma_semaphore, #tpu.memory_space<semaphore_mem>>) src(%23 : memref<2048xf32, #tpu.memory_space<any>>) dst(%25 : memref<2048xf32, #tpu.memory_space<any>>)
    } else {
    }
    return
  }
}

</mosaic_0001>

<llo_original>
// kernel: tpu_custom_call.1
$region0: #{tpu_custom_call.1}
  #allocation0 [shape = 'u32[]', space=smem, size = 0x4, offset = 0x4, fixed_abs, tag = 'smem constant byte address 0x4 - core index']
  #allocation1 [shape = 'u32[144,128]{1,0:T(1,128)}', space=vmem, size = 0x12000, scoped, tag = 'internal scratch']
  #allocation2 [shape = 's32[2]{0}', space=sflag, size = 0x8, scoped, tag = 'scratch operand']
  #allocation3 [shape = 's32[]', space=sflag, size = 0x4, offset = 0, fixed_abs, tag = 'sflag constant byte address 0x0 - dummy sync flag']
  #allocation4 [shape = 'u32[0]{0}', space=smem, size = 0, offset = 0, fixed_abs, tag = 'smem constant byte address 0x0 - null']
  %s0 = inlined_call_operand.hbm [shape: f32[1,2048], index: 0, kind: input, shape index: {}]
  %s1 = inlined_call_operand.hbm [shape: f32[1,2048], index: 1, kind: output, shape index: {}]
  %s2 = sld [smem:[#allocation0]]
  $region10: #{tpu_custom_call.1} parent=0
    _
  %s4 = ssub.s32 1, %s2
  %s5 = scalar_select 0, %s4, %s2
  %s6 = ssub.s32 0, 0
  %s7 = ssub.s32 0, 0
  %p8 = scmp.ne.s32.totalorder 0, 0
  %p9 = scmp.lt.s32.totalorder 0, 0
  %p10 = pnand %p9, %p8
  %p11 = pneg %p10
  %s12 = sadd.s32 0, 2
  %s13 = scalar_select %p11, %s12, 0
  %s14 = smul.u32 0, 16
  %s15 = smul.addr %s14, 16
  %s16 = scalar_lea.hbm %s0, %s15
  %s17 = smul.addr %s14, 16
  %s18 = scalar_lea.hbm %s1, %s17
  %s19 = scalar_lea.sflag [#allocation2], %s13
  %s21 = sshll.u32 1, 14
  %s22 = sxor.u32 4294967295, %s21
  %s25 = sshll.u32 3, 24
  %s26 = sxor.u32 4294967295, %s25
  %s27 = sand.u32 0, %s26
  %s29 = sor.u32 %s27, 0
  %32 = dma.general %s16, 256, %s18, %s19, [#allocation3], [#allocation4], %s29, 0
  %p33 = scmp.gt.s32.totalorder 0, 0
  // Predicated region
  $region2: #{tpu_custom_call.1} parent=0 // pred_check
    %p34 = pneg %p33
  $region3: #{tpu_custom_call.1} parent=0 // pred_check_branch
    %36 = sbr.rel (%p34) target = $region5
  $region4: #{tpu_custom_call.1} parent=0 // pred_region
    %s37 = ssub.s32 1, %s13
    %s38 = scalar_lea.sflag [#allocation2], %s37
    %40 = dma.done %s38, 256
  $region5: #{tpu_custom_call.1} parent=0 // pred_fallthru
    _
  %p41 = scmp.eq.s32.totalorder 0, 0
  // Predicated region
  $region6: #{tpu_custom_call.1} parent=0 // pred_check
    %p42 = pneg %p41
  $region7: #{tpu_custom_call.1} parent=0 // pred_check_branch
    %44 = sbr.rel (%p42) target = $region9
  $region8: #{tpu_custom_call.1} parent=0 // pred_region
    %46 = dma.done %s19, 256
  $region9: #{tpu_custom_call.1} parent=0 // pred_fallthru
    _
  %47 = vsyncmov [#allocation2]
  %s48 = vpop.sfrf %47
  %p49 = scmp.eq.s32.totalorder %s48, 0
  %p50 = pneg %p49
  %52 = shalt.err (%p50)
  %s53 = scalar_lea.sflag [#allocation2], 1
  %54 = vsyncmov %s53
  %s55 = vpop.sfrf %54
  %p56 = scmp.eq.s32.totalorder %s55, 0
  %p57 = pneg %p56
  %59 = shalt.err (%p57)

</llo_original>
